<compile_context>
chip_gen: v6e
topology: v6e:2x2x1
jax: 0.10.0
libtpu: 0.0.40
codegen_flags: <defaults>
</compile_context>

<pallas_src>
import jax
import jax.numpy as jnp
from jax import lax
from jax.experimental import pallas as pl
from jax.experimental.pallas import tpu as pltpu


def encoder_kernel(tok_ref, ep_ref, whh_ref, h0_ref, c0_ref, out_ref, cN_ref):
    """Fused one-hot embedding/projection + full LSTM recurrence (single call).

    tok_ref : (S, 1)  int32 token ids (VMEM)
    ep_ref  : (V, 4H) projected embedding table  (= emb @ W_ih + b_ih + b_hh)
    whh_ref : (H, 4H) hidden->gates weight (transposed vs. PyTorch)
    h0_ref  : (1, H)  initial hidden
    c0_ref  : (1, H)  initial cell
    out_ref : (S, H)  per-step hidden outputs (last row == final hidden)
    cN_ref  : (1, H)  final cell state
    """
    S = out_ref.shape[0]
    H = h0_ref.shape[-1]
    V = ep_ref.shape[0]

    # --- Fused embedding gather + input projection + bias: one MXU matmul. ---
    # one_hot(tok) @ emb_proj  ==  emb_table[tok] @ W_ih + b    (all timesteps)
    lane_v = lax.broadcasted_iota(jnp.int32, (S, V), 1)
    one_hot = jnp.where(lane_v == tok_ref[...], 1.0, 0.0).astype(jnp.float32)
    gates_x = jnp.dot(one_hot, ep_ref[...],
                      preferred_element_type=jnp.float32)            # (S, 4H)

    w_hh = whh_ref[...]

    # Hoisted lane masks: g-gate region + pre-scale so a single sigmoid pass
    # covers all four gates (tanh(x) = 2*sigmoid(2x) - 1).
    lane = lax.broadcasted_iota(jnp.int32, (1, 4 * H), 1)
    g_mask = (lane >= 2 * H) & (lane < 3 * H)
    gate_scale = jnp.where(g_mask, 2.0, 1.0).astype(jnp.float32)      # (1, 4H)

    h = h0_ref[...]
    c = c0_ref[...]
    # Static unroll: S is a small compile-time constant, so every index below
    # is static and the LLO scheduler sees the whole recurrence.
    for t in range(S):
        gates = gates_x[t:t + 1, :] + jnp.dot(
            h, w_hh, preferred_element_type=jnp.float32)              # (1, 4H)
        a = jax.nn.sigmoid(gates * gate_scale)   # single EUP pass over 4H lanes
        act = jnp.where(g_mask, 2.0 * a - 1.0, a)
        i_g = act[:, 0 * H:1 * H]
        f_g = act[:, 1 * H:2 * H]
        g_g = act[:, 2 * H:3 * H]
        o_g = act[:, 3 * H:4 * H]
        c = f_g * c + i_g * g_g
        h = o_g * jnp.tanh(c)
        out_ref[t:t + 1, :] = h                  # static-index per-step store
    cN_ref[...] = c


def encoder_rnn_forward(X, hidden, context, params):
    """Mirrors EncoderRNN.forward(X, hidden, context).

    Returns (output, hidden, context) with PyTorch shapes:
      output  : (seq_len, 1, H)
      hidden  : (1, 1, H)
      context : (1, 1, H)
    """
    emb_table, w_ih, w_hh, b = params
    V, E = emb_table.shape
    H = w_hh.shape[0]

    tok = X.astype(jnp.int32).reshape(-1, 1)
    seq_len = tok.shape[0]

    # Fold embedding + input projection + bias into one (V, 4H) table.
    emb_proj = (emb_table @ w_ih + b).astype(jnp.float32)             # (V, 4H)

    h0 = hidden.reshape(1, H).astype(jnp.float32)
    c0 = context.reshape(1, H).astype(jnp.float32)

    vmem = pl.BlockSpec(memory_space=pltpu.MemorySpace.VMEM)

    flops = 2 * seq_len * V * 4 * H + 2 * seq_len * H * 4 * H
    transcendentals = seq_len * (4 * H + H)
    bytes_accessed = 4 * (seq_len + V * 4 * H + H * 4 * H + 2 * H
                          + seq_len * H + H)

    out, cN = pl.pallas_call(
        encoder_kernel,
        out_shape=(
            jax.ShapeDtypeStruct((seq_len, H), jnp.float32),
            jax.ShapeDtypeStruct((1, H), jnp.float32),
        ),
        in_specs=[vmem, vmem, vmem, vmem, vmem],
        out_specs=(vmem, vmem),
        cost_estimate=pl.CostEstimate(
            flops=flops,
            transcendentals=transcendentals,
            bytes_accessed=bytes_accessed),
    )(tok, emb_proj, w_hh, h0, c0)

    hN = out[-1:, :]   # final hidden == last output row (redundant output removed)
    return out.reshape(seq_len, 1, H), hN.reshape(1, 1, H), cN.reshape(1, 1, H)


def lstm_reference(embedded, w_ih, w_hh, b, h0, c0):
    """Plain-JAX reference of the same recurrence (for correctness check)."""
    H = w_hh.shape[0]

    def step(carry, x_t):
        h, c = carry
        gates = x_t[None, :] @ w_ih + h @ w_hh + b
        i_g = jax.nn.sigmoid(gates[:, 0 * H:1 * H])
        f_g = jax.nn.sigmoid(gates[:, 1 * H:2 * H])
        g_g = jnp.tanh(gates[:, 2 * H:3 * H])
        o_g = jax.nn.sigmoid(gates[:, 3 * H:4 * H])
        c_new = f_g * c + i_g * g_g
        h_new = o_g * jnp.tanh(c_new)
        return (h_new, c_new), h_new[0]

    (h_fin, c_fin), outs = lax.scan(step, (h0, c0), embedded)
    return outs, h_fin, c_fin


if __name__ == "__main__":
    # Small shapes consistent with the module: seq_len=8 tokens, vocab=16,
    # embedding_size=32, hidden_size=32, batch=1 (the module hard-codes it).
    SEQ, VOCAB, E, H = 8, 16, 32, 32

    key = jax.random.PRNGKey(0)
    k_emb, k_wih, k_whh, k_bih, k_bhh, k_x = jax.random.split(key, 6)

    scale = 1.0 / jnp.sqrt(H)  # matches PyTorch nn.LSTM uniform(-1/sqrt(H), 1/sqrt(H))
    emb_table = jax.random.normal(k_emb, (VOCAB, E), dtype=jnp.float32)
    # Stored transposed relative to PyTorch (so we compute x @ W^T directly).
    w_ih = jax.random.uniform(k_wih, (E, 4 * H), jnp.float32, -scale, scale)
    w_hh = jax.random.uniform(k_whh, (H, 4 * H), jnp.float32, -scale, scale)
    b_ih = jax.random.uniform(k_bih, (1, 4 * H), jnp.float32, -scale, scale)
    b_hh = jax.random.uniform(k_bhh, (1, 4 * H), jnp.float32, -scale, scale)
    b = b_ih + b_hh
    params = (emb_table, w_ih, w_hh, b)

    X = jax.random.randint(k_x, (SEQ,), 0, VOCAB, dtype=jnp.int32)
    hidden = jnp.zeros((1, 1, H), jnp.float32)    # get_initial_hidden_state()
    context = jnp.zeros((1, 1, H), jnp.float32)

    out, hN, cN = encoder_rnn_forward(X, hidden, context, params)
    out = jax.block_until_ready(out)
    hN = jax.block_until_ready(hN)
    cN = jax.block_until_ready(cN)

    assert out.shape == (SEQ, 1, H)
    assert hN.shape == (1, 1, H) and cN.shape == (1, 1, H)

    # Cross-check against a plain-JAX reference of the same recurrence.
    # (Kernel uses tanh(x) = 2*sigmoid(2x) - 1; deviation vs jnp.tanh is < 1e-6.)
    embedded = jnp.take(emb_table, X, axis=0)
    ref_out, ref_h, ref_c = lstm_reference(
        embedded, w_ih, w_hh, b, hidden.reshape(1, H), context.reshape(1, H))
    assert jnp.allclose(out[:, 0, :], ref_out, atol=1e-5, rtol=1e-5)
    assert jnp.allclose(hN.reshape(1, H), ref_h, atol=1e-5, rtol=1e-5)
    assert jnp.allclose(cN.reshape(1, H), ref_c, atol=1e-5, rtol=1e-5)

    print("KERNEL_OK")
</pallas_src>

<mosaic_0001>
module attributes {stable_mosaic.version = 11 : i64} {
  func.func @encoder_kernel(%arg0: memref<8x1xi32, #tpu.memory_space<vmem>>, %arg1: memref<16x128xf32, #tpu.memory_space<vmem>>, %arg2: memref<32x128xf32, #tpu.memory_space<vmem>>, %arg3: memref<1x32xf32, #tpu.memory_space<vmem>>, %arg4: memref<1x32xf32, #tpu.memory_space<vmem>>, %arg5: memref<8x32xf32, #tpu.memory_space<vmem>>, %arg6: memref<1x32xf32, #tpu.memory_space<vmem>>) attributes {dimension_semantics = [], scalar_prefetch = 0 : i64, scratch_operands = 0 : i64, tpu.core_type = #tpu.core_type<tc>} {
    %0 = tpu.iota {dimensions = array<i32: 1>} : vector<8x16xi32>
    %c0 = arith.constant 0 : index
    %c0_0 = arith.constant 0 : index
    %1 = vector.load %arg0[%c0, %c0_0] : memref<8x1xi32, #tpu.memory_space<vmem>>, vector<8x1xi32>
    %2 = vector.broadcast %1 : vector<8x1xi32> to vector<8x16xi32>
    %3 = arith.cmpi eq, %0, %2 : vector<8x16xi32>
    %cst = arith.constant 1.000000e+00 : f32
    %cst_1 = arith.constant 0.000000e+00 : f32
    %4 = vector.broadcast %cst : f32 to vector<8x16xf32>
    %5 = vector.broadcast %cst_1 : f32 to vector<8x16xf32>
    %6 = arith.select %3, %4, %5 : vector<8x16xi1>, vector<8x16xf32>
    %c0_2 = arith.constant 0 : index
    %c0_3 = arith.constant 0 : index
    %7 = vector.load %arg1[%c0_2, %c0_3] : memref<16x128xf32, #tpu.memory_space<vmem>>, vector<16x128xf32>
    %cst_4 = arith.constant dense<0.000000e+00> : vector<8x128xf32>
    %8 = tpu.matmul %6, %7, %cst_4 {dimension_numbers = #tpu.dot_dimension_numbers<[1], [0], [0], [1], [0, 0, 1, 1], [], []>} : vector<8x16xf32>, vector<16x128xf32>, vector<8x128xf32> -> vector<8x128xf32>
    %c0_5 = arith.constant 0 : index
    %c0_6 = arith.constant 0 : index
    %9 = vector.load %arg2[%c0_5, %c0_6] : memref<32x128xf32, #tpu.memory_space<vmem>>, vector<32x128xf32>
    %10 = tpu.iota {dimensions = array<i32: 1>} : vector<1x128xi32>
    %c64_i32 = arith.constant 64 : i32
    %11 = vector.broadcast %c64_i32 : i32 to vector<1x128xi32>
    %12 = arith.cmpi sge, %10, %11 : vector<1x128xi32>
    %c96_i32 = arith.constant 96 : i32
    %13 = vector.broadcast %c96_i32 : i32 to vector<1x128xi32>
    %14 = arith.cmpi slt, %10, %13 : vector<1x128xi32>
    %15 = arith.andi %12, %14 : vector<1x128xi1>
    %cst_7 = arith.constant 2.000000e+00 : f32
    %cst_8 = arith.constant 1.000000e+00 : f32
    %16 = vector.broadcast %cst_7 : f32 to vector<1x128xf32>
    %17 = vector.broadcast %cst_8 : f32 to vector<1x128xf32>
    %18 = arith.select %15, %16, %17 : vector<1x128xi1>, vector<1x128xf32>
    %c0_9 = arith.constant 0 : index
    %c0_10 = arith.constant 0 : index
    %19 = vector.load %arg3[%c0_9, %c0_10] : memref<1x32xf32, #tpu.memory_space<vmem>>, vector<1x32xf32>
    %c0_11 = arith.constant 0 : index
    %c0_12 = arith.constant 0 : index
    %20 = vector.load %arg4[%c0_11, %c0_12] : memref<1x32xf32, #tpu.memory_space<vmem>>, vector<1x32xf32>
    %21 = vector.extract_strided_slice %8 {offsets = [0, 0], sizes = [1, 128], strides = [1, 1]} : vector<8x128xf32> to vector<1x128xf32>
    %cst_13 = arith.constant dense<0.000000e+00> : vector<1x128xf32>
    %22 = tpu.matmul %19, %9, %cst_13 {dimension_numbers = #tpu.dot_dimension_numbers<[1], [0], [0], [1], [0, 0, 1, 1], [], []>} : vector<1x32xf32>, vector<32x128xf32>, vector<1x128xf32> -> vector<1x128xf32>
    %23 = arith.addf %21, %22 : vector<1x128xf32>
    %24 = arith.mulf %23, %18 : vector<1x128xf32>
    %25 = arith.negf %24 : vector<1x128xf32>
    %26 = math.exp %25 : vector<1x128xf32>
    %cst_14 = arith.constant 1.000000e+00 : f32
    %27 = vector.broadcast %cst_14 : f32 to vector<1x128xf32>
    %28 = arith.addf %27, %26 : vector<1x128xf32>
    %29 = arith.divf %27, %28 : vector<1x128xf32>
    %cst_15 = arith.constant 2.000000e+00 : f32
    %30 = vector.broadcast %cst_15 : f32 to vector<1x128xf32>
    %31 = arith.mulf %30, %29 : vector<1x128xf32>
    %cst_16 = arith.constant 1.000000e+00 : f32
    %32 = vector.broadcast %cst_16 : f32 to vector<1x128xf32>
    %33 = arith.subf %31, %32 : vector<1x128xf32>
    %34 = arith.select %15, %33, %29 : vector<1x128xi1>, vector<1x128xf32>
    %35 = vector.extract_strided_slice %34 {offsets = [0, 0], sizes = [1, 32], strides = [1, 1]} : vector<1x128xf32> to vector<1x32xf32>
    %36 = vector.extract_strided_slice %34 {offsets = [0, 32], sizes = [1, 32], strides = [1, 1]} : vector<1x128xf32> to vector<1x32xf32>
    %37 = vector.extract_strided_slice %34 {offsets = [0, 64], sizes = [1, 32], strides = [1, 1]} : vector<1x128xf32> to vector<1x32xf32>
    %38 = vector.extract_strided_slice %34 {offsets = [0, 96], sizes = [1, 32], strides = [1, 1]} : vector<1x128xf32> to vector<1x32xf32>
    %39 = arith.mulf %36, %20 : vector<1x32xf32>
    %40 = arith.mulf %35, %37 : vector<1x32xf32>
    %41 = arith.addf %39, %40 : vector<1x32xf32>
    %42 = math.tanh %41 : vector<1x32xf32>
    %43 = arith.mulf %38, %42 : vector<1x32xf32>
    %c0_17 = arith.constant 0 : index
    %c0_18 = arith.constant 0 : index
    %44 = vector.load %arg5[%c0_17, %c0_18] : memref<8x32xf32, #tpu.memory_space<vmem>>, vector<1x32xf32>
    tpu.vector_store %arg5[%c0_17, %c0_18], %43 {strides = array<i32>} : memref<8x32xf32, #tpu.memory_space<vmem>>, vector<1x32xf32>,
    %45 = vector.extract_strided_slice %8 {offsets = [1, 0], sizes = [1, 128], strides = [1, 1]} : vector<8x128xf32> to vector<1x128xf32>
    %cst_19 = arith.constant dense<0.000000e+00> : vector<1x128xf32>
    %46 = tpu.matmul %43, %9, %cst_19 {dimension_numbers = #tpu.dot_dimension_numbers<[1], [0], [0], [1], [0, 0, 1, 1], [], []>} : vector<1x32xf32>, vector<32x128xf32>, vector<1x128xf32> -> vector<1x128xf32>
    %47 = arith.addf %45, %46 : vector<1x128xf32>
    %48 = arith.mulf %47, %18 : vector<1x128xf32>
    %49 = arith.negf %48 : vector<1x128xf32>
    %50 = math.exp %49 : vector<1x128xf32>
    %cst_20 = arith.constant 1.000000e+00 : f32
    %51 = vector.broadcast %cst_20 : f32 to vector<1x128xf32>
    %52 = arith.addf %51, %50 : vector<1x128xf32>
    %53 = arith.divf %51, %52 : vector<1x128xf32>
    %cst_21 = arith.constant 2.000000e+00 : f32
    %54 = vector.broadcast %cst_21 : f32 to vector<1x128xf32>
    %55 = arith.mulf %54, %53 : vector<1x128xf32>
    %cst_22 = arith.constant 1.000000e+00 : f32
    %56 = vector.broadcast %cst_22 : f32 to vector<1x128xf32>
    %57 = arith.subf %55, %56 : vector<1x128xf32>
    %58 = arith.select %15, %57, %53 : vector<1x128xi1>, vector<1x128xf32>
    %59 = vector.extract_strided_slice %58 {offsets = [0, 0], sizes = [1, 32], strides = [1, 1]} : vector<1x128xf32> to vector<1x32xf32>
    %60 = vector.extract_strided_slice %58 {offsets = [0, 32], sizes = [1, 32], strides = [1, 1]} : vector<1x128xf32> to vector<1x32xf32>
    %61 = vector.extract_strided_slice %58 {offsets = [0, 64], sizes = [1, 32], strides = [1, 1]} : vector<1x128xf32> to vector<1x32xf32>
    %62 = vector.extract_strided_slice %58 {offsets = [0, 96], sizes = [1, 32], strides = [1, 1]} : vector<1x128xf32> to vector<1x32xf32>
    %63 = arith.mulf %60, %41 : vector<1x32xf32>
    %64 = arith.mulf %59, %61 : vector<1x32xf32>
    %65 = arith.addf %63, %64 : vector<1x32xf32>
    %66 = math.tanh %65 : vector<1x32xf32>
    %67 = arith.mulf %62, %66 : vector<1x32xf32>
    %c1 = arith.constant 1 : index
    %c0_23 = arith.constant 0 : index
    %68 = vector.load %arg5[%c1, %c0_23] : memref<8x32xf32, #tpu.memory_space<vmem>>, vector<1x32xf32>
    tpu.vector_store %arg5[%c1, %c0_23], %67 {strides = array<i32>} : memref<8x32xf32, #tpu.memory_space<vmem>>, vector<1x32xf32>,
    %69 = vector.extract_strided_slice %8 {offsets = [2, 0], sizes = [1, 128], strides = [1, 1]} : vector<8x128xf32> to vector<1x128xf32>
    %cst_24 = arith.constant dense<0.000000e+00> : vector<1x128xf32>
    %70 = tpu.matmul %67, %9, %cst_24 {dimension_numbers = #tpu.dot_dimension_numbers<[1], [0], [0], [1], [0, 0, 1, 1], [], []>} : vector<1x32xf32>, vector<32x128xf32>, vector<1x128xf32> -> vector<1x128xf32>
    %71 = arith.addf %69, %70 : vector<1x128xf32>
    %72 = arith.mulf %71, %18 : vector<1x128xf32>
    %73 = arith.negf %72 : vector<1x128xf32>
    %74 = math.exp %73 : vector<1x128xf32>
    %cst_25 = arith.constant 1.000000e+00 : f32
    %75 = vector.broadcast %cst_25 : f32 to vector<1x128xf32>
    %76 = arith.addf %75, %74 : vector<1x128xf32>
    %77 = arith.divf %75, %76 : vector<1x128xf32>
    %cst_26 = arith.constant 2.000000e+00 : f32
    %78 = vector.broadcast %cst_26 : f32 to vector<1x128xf32>
    %79 = arith.mulf %78, %77 : vector<1x128xf32>
    %cst_27 = arith.constant 1.000000e+00 : f32
    %80 = vector.broadcast %cst_27 : f32 to vector<1x128xf32>
    %81 = arith.subf %79, %80 : vector<1x128xf32>
    %82 = arith.select %15, %81, %77 : vector<1x128xi1>, vector<1x128xf32>
    %83 = vector.extract_strided_slice %82 {offsets = [0, 0], sizes = [1, 32], strides = [1, 1]} : vector<1x128xf32> to vector<1x32xf32>
    %84 = vector.extract_strided_slice %82 {offsets = [0, 32], sizes = [1, 32], strides = [1, 1]} : vector<1x128xf32> to vector<1x32xf32>
    %85 = vector.extract_strided_slice %82 {offsets = [0, 64], sizes = [1, 32], strides = [1, 1]} : vector<1x128xf32> to vector<1x32xf32>
    %86 = vector.extract_strided_slice %82 {offsets = [0, 96], sizes = [1, 32], strides = [1, 1]} : vector<1x128xf32> to vector<1x32xf32>
    %87 = arith.mulf %84, %65 : vector<1x32xf32>
    %88 = arith.mulf %83, %85 : vector<1x32xf32>
    %89 = arith.addf %87, %88 : vector<1x32xf32>
    %90 = math.tanh %89 : vector<1x32xf32>
    %91 = arith.mulf %86, %90 : vector<1x32xf32>
    %c2 = arith.constant 2 : index
    %c0_28 = arith.constant 0 : index
    %92 = vector.load %arg5[%c2, %c0_28] : memref<8x32xf32, #tpu.memory_space<vmem>>, vector<1x32xf32>
    tpu.vector_store %arg5[%c2, %c0_28], %91 {strides = array<i32>} : memref<8x32xf32, #tpu.memory_space<vmem>>, vector<1x32xf32>,
    %93 = vector.extract_strided_slice %8 {offsets = [3, 0], sizes = [1, 128], strides = [1, 1]} : vector<8x128xf32> to vector<1x128xf32>
    %cst_29 = arith.constant dense<0.000000e+00> : vector<1x128xf32>
    %94 = tpu.matmul %91, %9, %cst_29 {dimension_numbers = #tpu.dot_dimension_numbers<[1], [0], [0], [1], [0, 0, 1, 1], [], []>} : vector<1x32xf32>, vector<32x128xf32>, vector<1x128xf32> -> vector<1x128xf32>
    %95 = arith.addf %93, %94 : vector<1x128xf32>
    %96 = arith.mulf %95, %18 : vector<1x128xf32>
    %97 = arith.negf %96 : vector<1x128xf32>
    %98 = math.exp %97 : vector<1x128xf32>
    %cst_30 = arith.constant 1.000000e+00 : f32
    %99 = vector.broadcast %cst_30 : f32 to vector<1x128xf32>
    %100 = arith.addf %99, %98 : vector<1x128xf32>
    %101 = arith.divf %99, %100 : vector<1x128xf32>
    %cst_31 = arith.constant 2.000000e+00 : f32
    %102 = vector.broadcast %cst_31 : f32 to vector<1x128xf32>
    %103 = arith.mulf %102, %101 : vector<1x128xf32>
    %cst_32 = arith.constant 1.000000e+00 : f32
    %104 = vector.broadcast %cst_32 : f32 to vector<1x128xf32>
    %105 = arith.subf %103, %104 : vector<1x128xf32>
    %106 = arith.select %15, %105, %101 : vector<1x128xi1>, vector<1x128xf32>
    %107 = vector.extract_strided_slice %106 {offsets = [0, 0], sizes = [1, 32], strides = [1, 1]} : vector<1x128xf32> to vector<1x32xf32>
    %108 = vector.extract_strided_slice %106 {offsets = [0, 32], sizes = [1, 32], strides = [1, 1]} : vector<1x128xf32> to vector<1x32xf32>
    %109 = vector.extract_strided_slice %106 {offsets = [0, 64], sizes = [1, 32], strides = [1, 1]} : vector<1x128xf32> to vector<1x32xf32>
    %110 = vector.extract_strided_slice %106 {offsets = [0, 96], sizes = [1, 32], strides = [1, 1]} : vector<1x128xf32> to vector<1x32xf32>
    %111 = arith.mulf %108, %89 : vector<1x32xf32>
    %112 = arith.mulf %107, %109 : vector<1x32xf32>
    %113 = arith.addf %111, %112 : vector<1x32xf32>
    %114 = math.tanh %113 : vector<1x32xf32>
    %115 = arith.mulf %110, %114 : vector<1x32xf32>
    %c3 = arith.constant 3 : index
    %c0_33 = arith.constant 0 : index
    %116 = vector.load %arg5[%c3, %c0_33] : memref<8x32xf32, #tpu.memory_space<vmem>>, vector<1x32xf32>
    tpu.vector_store %arg5[%c3, %c0_33], %115 {strides = array<i32>} : memref<8x32xf32, #tpu.memory_space<vmem>>, vector<1x32xf32>,
    %117 = vector.extract_strided_slice %8 {offsets = [4, 0], sizes = [1, 128], strides = [1, 1]} : vector<8x128xf32> to vector<1x128xf32>
    %cst_34 = arith.constant dense<0.000000e+00> : vector<1x128xf32>
    %118 = tpu.matmul %115, %9, %cst_34 {dimension_numbers = #tpu.dot_dimension_numbers<[1], [0], [0], [1], [0, 0, 1, 1], [], []>} : vector<1x32xf32>, vector<32x128xf32>, vector<1x128xf32> -> vector<1x128xf32>
    %119 = arith.addf %117, %118 : vector<1x128xf32>
    %120 = arith.mulf %119, %18 : vector<1x128xf32>
    %121 = arith.negf %120 : vector<1x128xf32>
    %122 = math.exp %121 : vector<1x128xf32>
    %cst_35 = arith.constant 1.000000e+00 : f32
    %123 = vector.broadcast %cst_35 : f32 to vector<1x128xf32>
    %124 = arith.addf %123, %122 : vector<1x128xf32>
    %125 = arith.divf %123, %124 : vector<1x128xf32>
    %cst_36 = arith.constant 2.000000e+00 : f32
    %126 = vector.broadcast %cst_36 : f32 to vector<1x128xf32>
    %127 = arith.mulf %126, %125 : vector<1x128xf32>
    %cst_37 = arith.constant 1.000000e+00 : f32
    %128 = vector.broadcast %cst_37 : f32 to vector<1x128xf32>
    %129 = arith.subf %127, %128 : vector<1x128xf32>
    %130 = arith.select %15, %129, %125 : vector<1x128xi1>, vector<1x128xf32>
    %131 = vector.extract_strided_slice %130 {offsets = [0, 0], sizes = [1, 32], strides = [1, 1]} : vector<1x128xf32> to vector<1x32xf32>
    %132 = vector.extract_strided_slice %130 {offsets = [0, 32], sizes = [1, 32], strides = [1, 1]} : vector<1x128xf32> to vector<1x32xf32>
    %133 = vector.extract_strided_slice %130 {offsets = [0, 64], sizes = [1, 32], strides = [1, 1]} : vector<1x128xf32> to vector<1x32xf32>
    %134 = vector.extract_strided_slice %130 {offsets = [0, 96], sizes = [1, 32], strides = [1, 1]} : vector<1x128xf32> to vector<1x32xf32>
    %135 = arith.mulf %132, %113 : vector<1x32xf32>
    %136 = arith.mulf %131, %133 : vector<1x32xf32>
    %137 = arith.addf %135, %136 : vector<1x32xf32>
    %138 = math.tanh %137 : vector<1x32xf32>
    %139 = arith.mulf %134, %138 : vector<1x32xf32>
    %c4 = arith.constant 4 : index
    %c0_38 = arith.constant 0 : index
    %140 = vector.load %arg5[%c4, %c0_38] : memref<8x32xf32, #tpu.memory_space<vmem>>, vector<1x32xf32>
    tpu.vector_store %arg5[%c4, %c0_38], %139 {strides = array<i32>} : memref<8x32xf32, #tpu.memory_space<vmem>>, vector<1x32xf32>,
    %141 = vector.extract_strided_slice %8 {offsets = [5, 0], sizes = [1, 128], strides = [1, 1]} : vector<8x128xf32> to vector<1x128xf32>
    %cst_39 = arith.constant dense<0.000000e+00> : vector<1x128xf32>
    %142 = tpu.matmul %139, %9, %cst_39 {dimension_numbers = #tpu.dot_dimension_numbers<[1], [0], [0], [1], [0, 0, 1, 1], [], []>} : vector<1x32xf32>, vector<32x128xf32>, vector<1x128xf32> -> vector<1x128xf32>
    %143 = arith.addf %141, %142 : vector<1x128xf32>
    %144 = arith.mulf %143, %18 : vector<1x128xf32>
    %145 = arith.negf %144 : vector<1x128xf32>
    %146 = math.exp %145 : vector<1x128xf32>
    %cst_40 = arith.constant 1.000000e+00 : f32
    %147 = vector.broadcast %cst_40 : f32 to vector<1x128xf32>
    %148 = arith.addf %147, %146 : vector<1x128xf32>
    %149 = arith.divf %147, %148 : vector<1x128xf32>
    %cst_41 = arith.constant 2.000000e+00 : f32
    %150 = vector.broadcast %cst_41 : f32 to vector<1x128xf32>
    %151 = arith.mulf %150, %149 : vector<1x128xf32>
    %cst_42 = arith.constant 1.000000e+00 : f32
    %152 = vector.broadcast %cst_42 : f32 to vector<1x128xf32>
    %153 = arith.subf %151, %152 : vector<1x128xf32>
    %154 = arith.select %15, %153, %149 : vector<1x128xi1>, vector<1x128xf32>
    %155 = vector.extract_strided_slice %154 {offsets = [0, 0], sizes = [1, 32], strides = [1, 1]} : vector<1x128xf32> to vector<1x32xf32>
    %156 = vector.extract_strided_slice %154 {offsets = [0, 32], sizes = [1, 32], strides = [1, 1]} : vector<1x128xf32> to vector<1x32xf32>
    %157 = vector.extract_strided_slice %154 {offsets = [0, 64], sizes = [1, 32], strides = [1, 1]} : vector<1x128xf32> to vector<1x32xf32>
    %158 = vector.extract_strided_slice %154 {offsets = [0, 96], sizes = [1, 32], strides = [1, 1]} : vector<1x128xf32> to vector<1x32xf32>
    %159 = arith.mulf %156, %137 : vector<1x32xf32>
    %160 = arith.mulf %155, %157 : vector<1x32xf32>
    %161 = arith.addf %159, %160 : vector<1x32xf32>
    %162 = math.tanh %161 : vector<1x32xf32>
    %163 = arith.mulf %158, %162 : vector<1x32xf32>
    %c5 = arith.constant 5 : index
    %c0_43 = arith.constant 0 : index
    %164 = vector.load %arg5[%c5, %c0_43] : memref<8x32xf32, #tpu.memory_space<vmem>>, vector<1x32xf32>
    tpu.vector_store %arg5[%c5, %c0_43], %163 {strides = array<i32>} : memref<8x32xf32, #tpu.memory_space<vmem>>, vector<1x32xf32>,
    %165 = vector.extract_strided_slice %8 {offsets = [6, 0], sizes = [1, 128], strides = [1, 1]} : vector<8x128xf32> to vector<1x128xf32>
    %cst_44 = arith.constant dense<0.000000e+00> : vector<1x128xf32>
    %166 = tpu.matmul %163, %9, %cst_44 {dimension_numbers = #tpu.dot_dimension_numbers<[1], [0], [0], [1], [0, 0, 1, 1], [], []>} : vector<1x32xf32>, vector<32x128xf32>, vector<1x128xf32> -> vector<1x128xf32>
    %167 = arith.addf %165, %166 : vector<1x128xf32>
    %168 = arith.mulf %167, %18 : vector<1x128xf32>
    %169 = arith.negf %168 : vector<1x128xf32>
    %170 = math.exp %169 : vector<1x128xf32>
    %cst_45 = arith.constant 1.000000e+00 : f32
    %171 = vector.broadcast %cst_45 : f32 to vector<1x128xf32>
    %172 = arith.addf %171, %170 : vector<1x128xf32>
    %173 = arith.divf %171, %172 : vector<1x128xf32>
    %cst_46 = arith.constant 2.000000e+00 : f32
    %174 = vector.broadcast %cst_46 : f32 to vector<1x128xf32>
    %175 = arith.mulf %174, %173 : vector<1x128xf32>
    %cst_47 = arith.constant 1.000000e+00 : f32
    %176 = vector.broadcast %cst_47 : f32 to vector<1x128xf32>
    %177 = arith.subf %175, %176 : vector<1x128xf32>
    %178 = arith.select %15, %177, %173 : vector<1x128xi1>, vector<1x128xf32>
    %179 = vector.extract_strided_slice %178 {offsets = [0, 0], sizes = [1, 32], strides = [1, 1]} : vector<1x128xf32> to vector<1x32xf32>
    %180 = vector.extract_strided_slice %178 {offsets = [0, 32], sizes = [1, 32], strides = [1, 1]} : vector<1x128xf32> to vector<1x32xf32>
    %181 = vector.extract_strided_slice %178 {offsets = [0, 64], sizes = [1, 32], strides = [1, 1]} : vector<1x128xf32> to vector<1x32xf32>
    %182 = vector.extract_strided_slice %178 {offsets = [0, 96], sizes = [1, 32], strides = [1, 1]} : vector<1x128xf32> to vector<1x32xf32>
    %183 = arith.mulf %180, %161 : vector<1x32xf32>
    %184 = arith.mulf %179, %181 : vector<1x32xf32>
    %185 = arith.addf %183, %184 : vector<1x32xf32>
    %186 = math.tanh %185 : vector<1x32xf32>
    %187 = arith.mulf %182, %186 : vector<1x32xf32>
    %c6 = arith.constant 6 : index
    %c0_48 = arith.constant 0 : index
    %188 = vector.load %arg5[%c6, %c0_48] : memref<8x32xf32, #tpu.memory_space<vmem>>, vector<1x32xf32>
    tpu.vector_store %arg5[%c6, %c0_48], %187 {strides = array<i32>} : memref<8x32xf32, #tpu.memory_space<vmem>>, vector<1x32xf32>,
    %189 = vector.extract_strided_slice %8 {offsets = [7, 0], sizes = [1, 128], strides = [1, 1]} : vector<8x128xf32> to vector<1x128xf32>
    %cst_49 = arith.constant dense<0.000000e+00> : vector<1x128xf32>
    %190 = tpu.matmul %187, %9, %cst_49 {dimension_numbers = #tpu.dot_dimension_numbers<[1], [0], [0], [1], [0, 0, 1, 1], [], []>} : vector<1x32xf32>, vector<32x128xf32>, vector<1x128xf32> -> vector<1x128xf32>
    %191 = arith.addf %189, %190 : vector<1x128xf32>
    %192 = arith.mulf %191, %18 : vector<1x128xf32>
    %193 = arith.negf %192 : vector<1x128xf32>
    %194 = math.exp %193 : vector<1x128xf32>
    %cst_50 = arith.constant 1.000000e+00 : f32
    %195 = vector.broadcast %cst_50 : f32 to vector<1x128xf32>
    %196 = arith.addf %195, %194 : vector<1x128xf32>
    %197 = arith.divf %195, %196 : vector<1x128xf32>
    %cst_51 = arith.constant 2.000000e+00 : f32
    %198 = vector.broadcast %cst_51 : f32 to vector<1x128xf32>
    %199 = arith.mulf %198, %197 : vector<1x128xf32>
    %cst_52 = arith.constant 1.000000e+00 : f32
    %200 = vector.broadcast %cst_52 : f32 to vector<1x128xf32>
    %201 = arith.subf %199, %200 : vector<1x128xf32>
    %202 = arith.select %15, %201, %197 : vector<1x128xi1>, vector<1x128xf32>
    %203 = vector.extract_strided_slice %202 {offsets = [0, 0], sizes = [1, 32], strides = [1, 1]} : vector<1x128xf32> to vector<1x32xf32>
    %204 = vector.extract_strided_slice %202 {offsets = [0, 32], sizes = [1, 32], strides = [1, 1]} : vector<1x128xf32> to vector<1x32xf32>
    %205 = vector.extract_strided_slice %202 {offsets = [0, 64], sizes = [1, 32], strides = [1, 1]} : vector<1x128xf32> to vector<1x32xf32>
    %206 = vector.extract_strided_slice %202 {offsets = [0, 96], sizes = [1, 32], strides = [1, 1]} : vector<1x128xf32> to vector<1x32xf32>
    %207 = arith.mulf %204, %185 : vector<1x32xf32>
    %208 = arith.mulf %203, %205 : vector<1x32xf32>
    %209 = arith.addf %207, %208 : vector<1x32xf32>
    %210 = math.tanh %209 : vector<1x32xf32>
    %211 = arith.mulf %206, %210 : vector<1x32xf32>
    %c7 = arith.constant 7 : index
    %c0_53 = arith.constant 0 : index
    %212 = vector.load %arg5[%c7, %c0_53] : memref<8x32xf32, #tpu.memory_space<vmem>>, vector<1x32xf32>
    tpu.vector_store %arg5[%c7, %c0_53], %211 {strides = array<i32>} : memref<8x32xf32, #tpu.memory_space<vmem>>, vector<1x32xf32>,
    %c0_54 = arith.constant 0 : index
    %c0_55 = arith.constant 0 : index
    %213 = vector.load %arg6[%c0_54, %c0_55] : memref<1x32xf32, #tpu.memory_space<vmem>>, vector<1x32xf32>
    tpu.vector_store %arg6[%c0_54, %c0_55], %209 {strides = array<i32>} : memref<1x32xf32, #tpu.memory_space<vmem>>, vector<1x32xf32>,
    return
  }
}

</mosaic_0001>

<llo_original>
// kernel: tpu_custom_call.1
$region0: #{tpu_custom_call.1}
  #allocation0 [shape = 'u32[]', space=smem, size = 0x4, offset = 0x4, fixed_abs, tag = 'smem constant byte address 0x4 - core index']
  #allocation1 [shape = 'u32[144,128]{1,0:T(1,128)}', space=vmem, size = 0x12000, scoped, tag = 'internal scratch']
  %s0 = inlined_call_operand.vmem [shape: s32[8,1], index: 0, kind: input, shape index: {}]
  %s1 = inlined_call_operand.hbm [shape: f32[16,128], index: 1, kind: input, shape index: {}]
  %s2 = inlined_call_operand.hbm [shape: f32[32,128], index: 2, kind: input, shape index: {}]
  %s3 = inlined_call_operand.vmem [shape: f32[1,32], index: 3, kind: input, shape index: {}]
  %s4 = inlined_call_operand.vmem [shape: f32[1,32], index: 4, kind: input, shape index: {}]
  %s5 = inlined_call_operand.hbm [shape: f32[8,32], index: 5, kind: output, shape index: {0}]
  %s6 = inlined_call_operand.hbm [shape: f32[1,32], index: 6, kind: output, shape index: {1}]
  %7 = xla_tuple %s5, %s6
  %s8 = sld [smem:[#allocation0]]
  $region46: #{tpu_custom_call.1} parent=0
    _
  %s10 = ssub.s32 1, %s8
  %s11 = scalar_select 0, %s10, %s8
  $region1: #{tpu_custom_call.1} parent=0
    #allocation2 [shape = 'u8[8192]{0}', space=vmem, size = 0x2000, scoped, tag = 'input window, operand 1, single buffered']
    #allocation3 [shape = 's32[1]{0}', space=sflag, size = 0x4, scoped, tag = 'scoped memory for tpu_custom_call.1']
    #allocation4 [shape = 's32[1]{0}', space=sflag, size = 0x4, scoped, tag = 'scoped memory for tpu_custom_call.1']
    #allocation5 [shape = 'u8[16384]{0}', space=vmem, size = 0x4000, scoped, tag = 'input window, operand 2, single buffered']
    #allocation6 [shape = 's32[1]{0}', space=sflag, size = 0x4, scoped, tag = 'scoped memory for tpu_custom_call.1']
    #allocation7 [shape = 'u8[4096]{0}', space=vmem, size = 0x1000, scoped, tag = 'output window, operand 0, single buffered']
    #allocation8 [shape = 'u8[512]{0}', space=vmem, size = 0x400, scoped, tag = 'output window, operand 1, single buffered']
    #allocation9 [shape = 's32[1]{0}', space=sflag, size = 0x4, scoped, tag = 'scoped memory for tpu_custom_call.1']
    %12 = vsyncpa [#allocation3], 0
    %13 = vsyncpa [#allocation6], 0
    %14 = vsyncpa [#allocation4], 0
    %15 = vsyncpa [#allocation9], 0
    // Predicated region
    $region2: #{tpu_custom_call.1} parent=1 // pred_check
      _
    $region3: #{tpu_custom_call.1} parent=1 // pred_check_branch
      %17 = sbr.rel (0) target = $region5
    $region4: #{tpu_custom_call.1} parent=1 // pred_region
      _
    $region5: #{tpu_custom_call.1} parent=1 // pred_fallthru
      _
    // Predicated region
    $region6: #{tpu_custom_call.1} parent=1 // pred_check
      _
    $region7: #{tpu_custom_call.1} parent=1 // pred_check_branch
      %19 = sbr.rel (0) target = $region9
    $region8: #{tpu_custom_call.1} parent=1 // pred_region
      %s21 = ssub.s32 256, 256
      %22 = vsyncadd [#allocation3], %s21
      %s23 = sshll.u32 [#allocation2], 4
      %s24 = int_to_ptr.vmem [resolvable:$true] %s23
      %29 = dma.hbm_to_vmem [thread:$0]  %s1, 256, %s24, [#allocation3], 128, 128, 8
    $region9: #{tpu_custom_call.1} parent=1 // pred_fallthru
      _
    // Predicated region
    $region10: #{tpu_custom_call.1} parent=1 // pred_check
      _
    $region11: #{tpu_custom_call.1} parent=1 // pred_check_branch
      %31 = sbr.rel (0) target = $region13
    $region12: #{tpu_custom_call.1} parent=1 // pred_region
      %s33 = ssub.s32 512, 512
      %34 = vsyncadd [#allocation6], %s33
      %s35 = sshll.u32 [#allocation5], 4
      %s36 = int_to_ptr.vmem [resolvable:$true] %s35
      %41 = dma.hbm_to_vmem [thread:$0]  %s2, 512, %s36, [#allocation6], 128, 128, 8
    $region13: #{tpu_custom_call.1} parent=1 // pred_fallthru
      _
    // Predicated region
    $region14: #{tpu_custom_call.1} parent=1 // pred_check
      _
    $region15: #{tpu_custom_call.1} parent=1 // pred_check_branch
      %43 = sbr.rel (0) target = $region17
    $region16: #{tpu_custom_call.1} parent=1 // pred_region
      _
    $region17: #{tpu_custom_call.1} parent=1 // pred_fallthru
      _
    // Predicated region
    $region18: #{tpu_custom_call.1} parent=1 // pred_check
      _
    $region19: #{tpu_custom_call.1} parent=1 // pred_check_branch
      %45 = sbr.rel (0) target = $region21
    $region20: #{tpu_custom_call.1} parent=1 // pred_region
      _
    $region21: #{tpu_custom_call.1} parent=1 // pred_fallthru
      _
    // Predicated region
    $region22: #{tpu_custom_call.1} parent=1 // pred_check
      _
    $region23: #{tpu_custom_call.1} parent=1 // pred_check_branch
      %47 = sbr.rel (0) target = $region25
    $region24: #{tpu_custom_call.1} parent=1 // pred_region
      %48 = dma.done [#allocation3], 256
    $region25: #{tpu_custom_call.1} parent=1 // pred_fallthru
      _
    // Predicated region
    $region26: #{tpu_custom_call.1} parent=1 // pred_check
      _
    $region27: #{tpu_custom_call.1} parent=1 // pred_check_branch
      %50 = sbr.rel (0) target = $region29
    $region28: #{tpu_custom_call.1} parent=1 // pred_region
      %51 = dma.done [#allocation6], 512
    $region29: #{tpu_custom_call.1} parent=1 // pred_fallthru
      _
    %v52 = vlaneseq
    %v53 = vand.u32 %v52, 127
    %v54 = vld [vmem:[%s0] sm:$0xff]
    %55 = vset.pattern.permute.xlu0 0
    %56 = vperm.xlu0 %55, %v54
    %v57 = vpop.permute.xlu0 %56
    %vm58 = vcmp.eq.s32.totalorder %v53, %v57
    %v59 = vsel %vm58, 1.0, 0.0
    %v60 = vld [vmem:[#allocation2] sm:$0xff]
    %v61 = vld [vmem:[#allocation2 + $0x8] sm:$0xff]
    %vm62 = vcmask 130048
    %v64 = vsel %vm62, %v59, 0
    %66 = vmatprep.subr.mxu0 0.0
    %67 = vmatpush1.msra.mxu0 0.0
    %68 = vmatprep.subr.mxu0 0.0
    %69 = vmatpush1.msra.mxu0 0.0
    %70 = vmatprep.subr.mxu0 0.0
    %71 = vmatpush1.msra.mxu0 0.0
    %72 = vmatprep.subr.mxu0 0.0
    %73 = vmatpush1.msra.mxu0 0.0
    %74 = vmatprep.subr.mxu0 0.0
    %75 = vmatpush1.msra.mxu0 0.0
    %76 = vmatprep.subr.mxu0 0.0
    %77 = vmatpush1.msra.mxu0 0.0
    %78 = vmatprep.subr.mxu0 0.0
    %79 = vmatpush1.msra.mxu0 0.0
    %80 = vmatprep.subr.mxu0 0.0
    %81 = vmatpush1.msra.mxu0 0.0
    %82 = vmatprep.subr.mxu0 0.0
    %83 = vmatpush1.msra.mxu0 0.0
    %84 = vmatprep.subr.mxu0 0.0
    %85 = vmatpush1.msra.mxu0 0.0
    %86 = vmatprep.subr.mxu0 0.0
    %87 = vmatpush1.msra.mxu0 0.0
    %88 = vmatprep.subr.mxu0 0.0
    %89 = vmatpush1.msra.mxu0 0.0
    %90 = vmatprep.subr.mxu0 0.0
    %91 = vmatpush1.msra.mxu0 0.0
    %92 = vmatprep.subr.mxu0 0.0
    %93 = vmatpush1.msra.mxu0 0.0
    %94 = vmatprep.subr.mxu0 0.0
    %95 = vmatpush1.msra.mxu0 %v61
    %96 = vmatprep.subr.mxu0 0.0
    %97 = vmatpush1.msra.mxu0 %v60
    %98 = vmatprep.subr.mxu0 0.0
    %99 = vmatpush2.msra.mxu0 0.0
    %100 = vmatprep.subr.mxu0 0.0
    %101 = vmatpush2.msra.mxu0 0.0
    %102 = vmatprep.subr.mxu0 0.0
    %103 = vmatpush2.msra.mxu0 0.0
    %104 = vmatprep.subr.mxu0 0.0
    %105 = vmatpush2.msra.mxu0 0.0
    %106 = vmatprep.subr.mxu0 0.0
    %107 = vmatpush2.msra.mxu0 0.0
    %108 = vmatprep.subr.mxu0 0.0
    %109 = vmatpush2.msra.mxu0 0.0
    %110 = vmatprep.subr.mxu0 0.0
    %111 = vmatpush2.msra.mxu0 0.0
    %112 = vmatprep.subr.mxu0 0.0
    %113 = vmatpush2.msra.mxu0 0.0
    %114 = vmatprep.subr.mxu0 0.0
    %115 = vmatpush2.msra.mxu0 0.0
    %116 = vmatprep.subr.mxu0 0.0
    %117 = vmatpush2.msra.mxu0 0.0
    %118 = vmatprep.subr.mxu0 0.0
    %119 = vmatpush2.msra.mxu0 0.0
    %120 = vmatprep.subr.mxu0 0.0
    %121 = vmatpush2.msra.mxu0 0.0
    %122 = vmatprep.subr.mxu0 0.0
    %123 = vmatpush2.msra.mxu0 0.0
    %124 = vmatprep.subr.mxu0 0.0
    %125 = vmatpush2.msra.mxu0 0.0
    %126 = vmatprep.subr.mxu0 0.0
    %127 = vmatpush2.msra.mxu0 0.0
    %128 = vmatprep.subr.mxu0 0.0
    %129 = vmatpush2.msra.mxu0 0.0
    %130 = vmatprep.mubr.f32.mxu0 0.0
    %131 = vmatmul.mubr.f32.gmra.mxu0 %v64
    %v132 = vpop.f32.mrf.mxu0
    %v133 = vadd.f32 0.0, %v132
    %v134 = vpop.f32.mrf.mxu0
    %135 = vdwg.mxu0
    %v136 = vld [vmem:[#allocation5] sm:$0xff]
    %v137 = vld [vmem:[#allocation5 + $0x8] sm:$0xff]
    %v138 = vld [vmem:[#allocation5 + $0x10] sm:$0xff]
    %v139 = vld [vmem:[#allocation5 + $0x18] sm:$0xff]
    %vm140 = vcmp.ge.s32.totalorder %v53, 64
    %vm141 = vcmp.lt.s32.totalorder %v53, 96
    %vm142 = vmand %vm140, %vm141
    %v143 = vsel %vm142, 2.0, 1.0
    %v144 = vld [vmem:[%s3] sm:$0x1]
    %v145 = vld [vmem:[%s4] sm:$0x1]
    %vm146 = vcmask 261120
    %v148 = vsel %vm146, %v144, 0
    %150 = vmatprep.subr.mxu0 0.0
    %151 = vmatpush1.msra.mxu0 0.0
    %152 = vmatprep.subr.mxu0 0.0
    %153 = vmatpush1.msra.mxu0 0.0
    %154 = vmatprep.subr.mxu0 0.0
    %155 = vmatpush1.msra.mxu0 0.0
    %156 = vmatprep.subr.mxu0 0.0
    %157 = vmatpush1.msra.mxu0 0.0
    %158 = vmatprep.subr.mxu0 0.0
    %159 = vmatpush1.msra.mxu0 0.0
    %160 = vmatprep.subr.mxu0 0.0
    %161 = vmatpush1.msra.mxu0 0.0
    %162 = vmatprep.subr.mxu0 0.0
    %163 = vmatpush1.msra.mxu0 0.0
    %164 = vmatprep.subr.mxu0 0.0
    %165 = vmatpush1.msra.mxu0 0.0
    %166 = vmatprep.subr.mxu0 0.0
    %167 = vmatpush1.msra.mxu0 0.0
    %168 = vmatprep.subr.mxu0 0.0
    %169 = vmatpush1.msra.mxu0 0.0
    %170 = vmatprep.subr.mxu0 0.0
    %171 = vmatpush1.msra.mxu0 0.0
    %172 = vmatprep.subr.mxu0 0.0
    %173 = vmatpush1.msra.mxu0 0.0
    %174 = vmatprep.subr.mxu0 0.0
    %175 = vmatpush1.msra.mxu0 %v139
    %176 = vmatprep.subr.mxu0 0.0
    %177 = vmatpush1.msra.mxu0 %v138
    %178 = vmatprep.subr.mxu0 0.0
    %179 = vmatpush1.msra.mxu0 %v137
    %180 = vmatprep.subr.mxu0 0.0
    %181 = vmatpush1.msra.mxu0 %v136
    %182 = vmatprep.subr.mxu0 0.0
    %183 = vmatpush2.msra.mxu0 0.0
    %184 = vmatprep.subr.mxu0 0.0
    %185 = vmatpush2.msra.mxu0 0.0
    %186 = vmatprep.subr.mxu0 0.0
    %187 = vmatpush2.msra.mxu0 0.0
    %188 = vmatprep.subr.mxu0 0.0
    %189 = vmatpush2.msra.mxu0 0.0
    %190 = vmatprep.subr.mxu0 0.0
    %191 = vmatpush2.msra.mxu0 0.0
    %192 = vmatprep.subr.mxu0 0.0
    %193 = vmatpush2.msra.mxu0 0.0
    %194 = vmatprep.subr.mxu0 0.0
    %195 = vmatpush2.msra.mxu0 0.0
    %196 = vmatprep.subr.mxu0 0.0
    %197 = vmatpush2.msra.mxu0 0.0
    %198 = vmatprep.subr.mxu0 0.0
    %199 = vmatpush2.msra.mxu0 0.0
    %200 = vmatprep.subr.mxu0 0.0
    %201 = vmatpush2.msra.mxu0 0.0
    %202 = vmatprep.subr.mxu0 0.0
    %203 = vmatpush2.msra.mxu0 0.0
    %204 = vmatprep.subr.mxu0 0.0
    %205 = vmatpush2.msra.mxu0 0.0
    %206 = vmatprep.subr.mxu0 0.0
    %207 = vmatpush2.msra.mxu0 0.0
    %208 = vmatprep.subr.mxu0 0.0
    %209 = vmatpush2.msra.mxu0 0.0
    %210 = vmatprep.subr.mxu0 0.0
    %211 = vmatpush2.msra.mxu0 0.0
    %212 = vmatprep.subr.mxu0 0.0
    %213 = vmatpush2.msra.mxu0 0.0
    %214 = vmatprep.mubr.f32.mxu0 0.0
    %215 = vmatmul.mubr.f32.gmra.mxu0 %v148
    %v216 = vpop.f32.mrf.mxu0
    %v217 = vadd.f32 0.0, %v216
    %v218 = vpop.f32.mrf.mxu0
    %219 = vdwg.mxu0
    %v220 = vadd.f32 %v133, %v217
    %v221 = vmul.f32 %v220, %v143
    %v222 = vxor.u32 %v221, 2147483648
    %v223 = vmul.f32 %v222, 1.442695
    %v224 = vpow.pop %v223
    %v225 = vadd.f32 %v224, 1.0
    %v226 = vrcp.pop %v225
    %v227 = vmul.f32 1.0, %v226
    %v228 = vmul.f32 %v227, 2.0
    %v229 = vsub.f32 %v228, 1.0
    %v230 = vsel %vm142, %v229, %v227
    %v232 = vlaneseq
    %v233 = vshrl.u32 %v232, 7
    %v234 = vsub.s32 0, %v233
    %v235 = vrot.slane %v145, %v234
    %236 = vrot.lane.b32.xlu0 %v235, 32
    %v237 = vpop.permute.xlu0 %236
    %v239 = vmul.f32 %v230, %v237
    %241 = vrot.lane.b32.xlu0 %v230, 64
    %v242 = vpop.permute.xlu0 %241
    %v244 = vmul.f32 %v230, %v242
    %246 = vrot.lane.b32.xlu0 %v244, 32
    %v247 = vpop.permute.xlu0 %246
    %v249 = vadd.f32 %v239, %v247
    %v250 = vtanh.pop %v249
    %252 = vrot.lane.b32.xlu0 %v250, 64
    %v253 = vpop.permute.xlu0 %252
    %v255 = vmul.f32 %v230, %v253
    %257 = vrot.lane.b32.xlu0 %v255, 32
    %v258 = vpop.permute.xlu0 %257
    %vm260 = vcmask 253952
    %261 = vst.msk [vmem:[#allocation7] sm:$0x1] %vm260, %v258
    %v262 = vsel %vm146, %v258, 0
    %264 = vmatprep.subr.mxu0 0.0
    %265 = vmatpush1.msra.mxu0 0.0
    %266 = vmatprep.subr.mxu0 0.0
    %267 = vmatpush1.msra.mxu0 0.0
    %268 = vmatprep.subr.mxu0 0.0
    %269 = vmatpush1.msra.mxu0 0.0
    %270 = vmatprep.subr.mxu0 0.0
    %271 = vmatpush1.msra.mxu0 0.0
    %272 = vmatprep.subr.mxu0 0.0
    %273 = vmatpush1.msra.mxu0 0.0
    %274 = vmatprep.subr.mxu0 0.0
    %275 = vmatpush1.msra.mxu0 0.0
    %276 = vmatprep.subr.mxu0 0.0
    %277 = vmatpush1.msra.mxu0 0.0
    %278 = vmatprep.subr.mxu0 0.0
    %279 = vmatpush1.msra.mxu0 0.0
    %280 = vmatprep.subr.mxu0 0.0
    %281 = vmatpush1.msra.mxu0 0.0
    %282 = vmatprep.subr.mxu0 0.0
    %283 = vmatpush1.msra.mxu0 0.0
    %284 = vmatprep.subr.mxu0 0.0
    %285 = vmatpush1.msra.mxu0 0.0
    %286 = vmatprep.subr.mxu0 0.0
    %287 = vmatpush1.msra.mxu0 0.0
    %288 = vmatprep.subr.mxu0 0.0
    %289 = vmatpush1.msra.mxu0 %v139
    %290 = vmatprep.subr.mxu0 0.0
    %291 = vmatpush1.msra.mxu0 %v138
    %292 = vmatprep.subr.mxu0 0.0
    %293 = vmatpush1.msra.mxu0 %v137
    %294 = vmatprep.subr.mxu0 0.0
    %295 = vmatpush1.msra.mxu0 %v136
    %296 = vmatprep.subr.mxu0 0.0
    %297 = vmatpush2.msra.mxu0 0.0
    %298 = vmatprep.subr.mxu0 0.0
    %299 = vmatpush2.msra.mxu0 0.0
    %300 = vmatprep.subr.mxu0 0.0
    %301 = vmatpush2.msra.mxu0 0.0
    %302 = vmatprep.subr.mxu0 0.0
    %303 = vmatpush2.msra.mxu0 0.0
    %304 = vmatprep.subr.mxu0 0.0
    %305 = vmatpush2.msra.mxu0 0.0
    %306 = vmatprep.subr.mxu0 0.0
    %307 = vmatpush2.msra.mxu0 0.0
    %308 = vmatprep.subr.mxu0 0.0
    %309 = vmatpush2.msra.mxu0 0.0
    %310 = vmatprep.subr.mxu0 0.0
    %311 = vmatpush2.msra.mxu0 0.0
    %312 = vmatprep.subr.mxu0 0.0
    %313 = vmatpush2.msra.mxu0 0.0
    %314 = vmatprep.subr.mxu0 0.0
    %315 = vmatpush2.msra.mxu0 0.0
    %316 = vmatprep.subr.mxu0 0.0
    %317 = vmatpush2.msra.mxu0 0.0
    %318 = vmatprep.subr.mxu0 0.0
    %319 = vmatpush2.msra.mxu0 0.0
    %320 = vmatprep.subr.mxu0 0.0
    %321 = vmatpush2.msra.mxu0 0.0
    %322 = vmatprep.subr.mxu0 0.0
    %323 = vmatpush2.msra.mxu0 0.0
    %324 = vmatprep.subr.mxu0 0.0
    %325 = vmatpush2.msra.mxu0 0.0
    %326 = vmatprep.subr.mxu0 0.0
    %327 = vmatpush2.msra.mxu0 0.0
    %328 = vmatprep.mubr.f32.mxu0 0.0
    %329 = vmatmul.mubr.f32.gmra.mxu0 %v262
    %v330 = vpop.f32.mrf.mxu0
    %v331 = vadd.f32 0.0, %v330
    %v332 = vpop.f32.mrf.mxu0
    %333 = vdwg.mxu0
    %v335 = vrot.slane %v331, 7
    %v337 = vadd.f32 %v133, %v335
    %v338 = vmul.f32 %v337, %v143
    %v339 = vxor.u32 %v338, 2147483648
    %v340 = vmul.f32 %v339, 1.442695
    %v341 = vpow.pop %v340
    %v342 = vadd.f32 %v341, 1.0
    %v343 = vrcp.pop %v342
    %v344 = vmul.f32 1.0, %v343
    %v345 = vmul.f32 %v344, 2.0
    %v346 = vsub.f32 %v345, 1.0
    %v347 = vsel %vm142, %v346, %v344
    %v349 = vrot.slane %v249, 7
    %v351 = vmul.f32 %v347, %v349
    %353 = vrot.lane.b32.xlu0 %v347, 64
    %v354 = vpop.permute.xlu0 %353
    %v356 = vmul.f32 %v347, %v354
    %358 = vrot.lane.b32.xlu0 %v356, 32
    %v359 = vpop.permute.xlu0 %358
    %v361 = vadd.f32 %v351, %v359
    %v362 = vtanh.pop %v361
    %364 = vrot.lane.b32.xlu0 %v362, 64
    %v365 = vpop.permute.xlu0 %364
    %v367 = vmul.f32 %v347, %v365
    %369 = vrot.lane.b32.xlu0 %v367, 32
    %v370 = vpop.permute.xlu0 %369
    %vm372 = vcmask 254977
    %373 = vst.msk [vmem:[#allocation7] sm:$0x2] %vm372, %v370
    %v374 = vrot.slane %v367, 1
    %375 = vrot.lane.b32.xlu0 %v374, 32
    %v376 = vpop.permute.xlu0 %375
    %v377 = vsel %vm146, %v376, 0
    %379 = vmatprep.subr.mxu0 0.0
    %380 = vmatpush1.msra.mxu0 0.0
    %381 = vmatprep.subr.mxu0 0.0
    %382 = vmatpush1.msra.mxu0 0.0
    %383 = vmatprep.subr.mxu0 0.0
    %384 = vmatpush1.msra.mxu0 0.0
    %385 = vmatprep.subr.mxu0 0.0
    %386 = vmatpush1.msra.mxu0 0.0
    %387 = vmatprep.subr.mxu0 0.0
    %388 = vmatpush1.msra.mxu0 0.0
    %389 = vmatprep.subr.mxu0 0.0
    %390 = vmatpush1.msra.mxu0 0.0
    %391 = vmatprep.subr.mxu0 0.0
    %392 = vmatpush1.msra.mxu0 0.0
    %393 = vmatprep.subr.mxu0 0.0
    %394 = vmatpush1.msra.mxu0 0.0
    %395 = vmatprep.subr.mxu0 0.0
    %396 = vmatpush1.msra.mxu0 0.0
    %397 = vmatprep.subr.mxu0 0.0
    %398 = vmatpush1.msra.mxu0 0.0
    %399 = vmatprep.subr.mxu0 0.0
    %400 = vmatpush1.msra.mxu0 0.0
    %401 = vmatprep.subr.mxu0 0.0
    %402 = vmatpush1.msra.mxu0 0.0
    %403 = vmatprep.subr.mxu0 0.0
    %404 = vmatpush1.msra.mxu0 %v139
    %405 = vmatprep.subr.mxu0 0.0
    %406 = vmatpush1.msra.mxu0 %v138
    %407 = vmatprep.subr.mxu0 0.0
    %408 = vmatpush1.msra.mxu0 %v137
    %409 = vmatprep.subr.mxu0 0.0
    %410 = vmatpush1.msra.mxu0 %v136
    %411 = vmatprep.subr.mxu0 0.0
    %412 = vmatpush2.msra.mxu0 0.0
    %413 = vmatprep.subr.mxu0 0.0
    %414 = vmatpush2.msra.mxu0 0.0
    %415 = vmatprep.subr.mxu0 0.0
    %416 = vmatpush2.msra.mxu0 0.0
    %417 = vmatprep.subr.mxu0 0.0
    %418 = vmatpush2.msra.mxu0 0.0
    %419 = vmatprep.subr.mxu0 0.0
    %420 = vmatpush2.msra.mxu0 0.0
    %421 = vmatprep.subr.mxu0 0.0
    %422 = vmatpush2.msra.mxu0 0.0
    %423 = vmatprep.subr.mxu0 0.0
    %424 = vmatpush2.msra.mxu0 0.0
    %425 = vmatprep.subr.mxu0 0.0
    %426 = vmatpush2.msra.mxu0 0.0
    %427 = vmatprep.subr.mxu0 0.0
    %428 = vmatpush2.msra.mxu0 0.0
    %429 = vmatprep.subr.mxu0 0.0
    %430 = vmatpush2.msra.mxu0 0.0
    %431 = vmatprep.subr.mxu0 0.0
    %432 = vmatpush2.msra.mxu0 0.0
    %433 = vmatprep.subr.mxu0 0.0
    %434 = vmatpush2.msra.mxu0 0.0
    %435 = vmatprep.subr.mxu0 0.0
    %436 = vmatpush2.msra.mxu0 0.0
    %437 = vmatprep.subr.mxu0 0.0
    %438 = vmatpush2.msra.mxu0 0.0
    %439 = vmatprep.subr.mxu0 0.0
    %440 = vmatpush2.msra.mxu0 0.0
    %441 = vmatprep.subr.mxu0 0.0
    %442 = vmatpush2.msra.mxu0 0.0
    %443 = vmatprep.mubr.f32.mxu0 0.0
    %444 = vmatmul.mubr.f32.gmra.mxu0 %v377
    %v445 = vpop.f32.mrf.mxu0
    %v446 = vadd.f32 0.0, %v445
    %v447 = vpop.f32.mrf.mxu0
    %448 = vdwg.mxu0
    %v450 = vrot.slane %v446, 6
    %v452 = vadd.f32 %v133, %v450
    %v453 = vmul.f32 %v452, %v143
    %v454 = vxor.u32 %v453, 2147483648
    %v455 = vmul.f32 %v454, 1.442695
    %v456 = vpow.pop %v455
    %v457 = vadd.f32 %v456, 1.0
    %v458 = vrcp.pop %v457
    %v459 = vmul.f32 1.0, %v458
    %v460 = vmul.f32 %v459, 2.0
    %v461 = vsub.f32 %v460, 1.0
    %v462 = vsel %vm142, %v461, %v459
    %v464 = vrot.slane %v361, 7
    %v466 = vmul.f32 %v462, %v464
    %468 = vrot.lane.b32.xlu0 %v462, 64
    %v469 = vpop.permute.xlu0 %468
    %v471 = vmul.f32 %v462, %v469
    %473 = vrot.lane.b32.xlu0 %v471, 32
    %v474 = vpop.permute.xlu0 %473
    %v476 = vadd.f32 %v466, %v474
    %v477 = vtanh.pop %v476
    %479 = vrot.lane.b32.xlu0 %v477, 64
    %v480 = vpop.permute.xlu0 %479
    %v482 = vmul.f32 %v462, %v480
    %484 = vrot.lane.b32.xlu0 %v482, 32
    %v485 = vpop.permute.xlu0 %484
    %vm487 = vcmask 256002
    %488 = vst.msk [vmem:[#allocation7] sm:$0x4] %vm487, %v485
    %v489 = vrot.slane %v482, 2
    %490 = vrot.lane.b32.xlu0 %v489, 32
    %v491 = vpop.permute.xlu0 %490
    %v492 = vsel %vm146, %v491, 0
    %494 = vmatprep.subr.mxu0 0.0
    %495 = vmatpush1.msra.mxu0 0.0
    %496 = vmatprep.subr.mxu0 0.0
    %497 = vmatpush1.msra.mxu0 0.0
    %498 = vmatprep.subr.mxu0 0.0
    %499 = vmatpush1.msra.mxu0 0.0
    %500 = vmatprep.subr.mxu0 0.0
    %501 = vmatpush1.msra.mxu0 0.0
    %502 = vmatprep.subr.mxu0 0.0
    %503 = vmatpush1.msra.mxu0 0.0
    %504 = vmatprep.subr.mxu0 0.0
    %505 = vmatpush1.msra.mxu0 0.0
    %506 = vmatprep.subr.mxu0 0.0
    %507 = vmatpush1.msra.mxu0 0.0
    %508 = vmatprep.subr.mxu0 0.0
    %509 = vmatpush1.msra.mxu0 0.0
    %510 = vmatprep.subr.mxu0 0.0
    %511 = vmatpush1.msra.mxu0 0.0
    %512 = vmatprep.subr.mxu0 0.0
    %513 = vmatpush1.msra.mxu0 0.0
    %514 = vmatprep.subr.mxu0 0.0
    %515 = vmatpush1.msra.mxu0 0.0
    %516 = vmatprep.subr.mxu0 0.0
    %517 = vmatpush1.msra.mxu0 0.0
    %518 = vmatprep.subr.mxu0 0.0
    %519 = vmatpush1.msra.mxu0 %v139
    %520 = vmatprep.subr.mxu0 0.0
    %521 = vmatpush1.msra.mxu0 %v138
    %522 = vmatprep.subr.mxu0 0.0
    %523 = vmatpush1.msra.mxu0 %v137
    %524 = vmatprep.subr.mxu0 0.0
    %525 = vmatpush1.msra.mxu0 %v136
    %526 = vmatprep.subr.mxu0 0.0
    %527 = vmatpush2.msra.mxu0 0.0
    %528 = vmatprep.subr.mxu0 0.0
    %529 = vmatpush2.msra.mxu0 0.0
    %530 = vmatprep.subr.mxu0 0.0
    %531 = vmatpush2.msra.mxu0 0.0
    %532 = vmatprep.subr.mxu0 0.0
    %533 = vmatpush2.msra.mxu0 0.0
    %534 = vmatprep.subr.mxu0 0.0
    %535 = vmatpush2.msra.mxu0 0.0
    %536 = vmatprep.subr.mxu0 0.0
    %537 = vmatpush2.msra.mxu0 0.0
    %538 = vmatprep.subr.mxu0 0.0
    %539 = vmatpush2.msra.mxu0 0.0
    %540 = vmatprep.subr.mxu0 0.0
    %541 = vmatpush2.msra.mxu0 0.0
    %542 = vmatprep.subr.mxu0 0.0
    %543 = vmatpush2.msra.mxu0 0.0
    %544 = vmatprep.subr.mxu0 0.0
    %545 = vmatpush2.msra.mxu0 0.0
    %546 = vmatprep.subr.mxu0 0.0
    %547 = vmatpush2.msra.mxu0 0.0
    %548 = vmatprep.subr.mxu0 0.0
    %549 = vmatpush2.msra.mxu0 0.0
    %550 = vmatprep.subr.mxu0 0.0
    %551 = vmatpush2.msra.mxu0 0.0
    %552 = vmatprep.subr.mxu0 0.0
    %553 = vmatpush2.msra.mxu0 0.0
    %554 = vmatprep.subr.mxu0 0.0
    %555 = vmatpush2.msra.mxu0 0.0
    %556 = vmatprep.subr.mxu0 0.0
    %557 = vmatpush2.msra.mxu0 0.0
    %558 = vmatprep.mubr.f32.mxu0 0.0
    %559 = vmatmul.mubr.f32.gmra.mxu0 %v492
    %v560 = vpop.f32.mrf.mxu0
    %v561 = vadd.f32 0.0, %v560
    %v562 = vpop.f32.mrf.mxu0
    %563 = vdwg.mxu0
    %v565 = vrot.slane %v561, 5
    %v567 = vadd.f32 %v133, %v565
    %v568 = vmul.f32 %v567, %v143
    %v569 = vxor.u32 %v568, 2147483648
    %v570 = vmul.f32 %v569, 1.442695
    %v571 = vpow.pop %v570
    %v572 = vadd.f32 %v571, 1.0
    %v573 = vrcp.pop %v572
    %v574 = vmul.f32 1.0, %v573
    %v575 = vmul.f32 %v574, 2.0
    %v576 = vsub.f32 %v575, 1.0
    %v577 = vsel %vm142, %v576, %v574
    %v579 = vrot.slane %v476, 7
    %v581 = vmul.f32 %v577, %v579
    %583 = vrot.lane.b32.xlu0 %v577, 64
    %v584 = vpop.permute.xlu0 %583
    %v586 = vmul.f32 %v577, %v584
    %588 = vrot.lane.b32.xlu0 %v586, 32
    %v589 = vpop.permute.xlu0 %588
    %v591 = vadd.f32 %v581, %v589
    %v592 = vtanh.pop %v591
    %594 = vrot.lane.b32.xlu0 %v592, 64
    %v595 = vpop.permute.xlu0 %594
    %v597 = vmul.f32 %v577, %v595
    %599 = vrot.lane.b32.xlu0 %v597, 32
    %v600 = vpop.permute.xlu0 %599
    %vm602 = vcmask 257027
    %603 = vst.msk [vmem:[#allocation7] sm:$0x8] %vm602, %v600
    %v604 = vrot.slane %v597, 3
    %605 = vrot.lane.b32.xlu0 %v604, 32
    %v606 = vpop.permute.xlu0 %605
    %v607 = vsel %vm146, %v606, 0
    %609 = vmatprep.subr.mxu0 0.0
    %610 = vmatpush1.msra.mxu0 0.0
    %611 = vmatprep.subr.mxu0 0.0
    %612 = vmatpush1.msra.mxu0 0.0
    %613 = vmatprep.subr.mxu0 0.0
    %614 = vmatpush1.msra.mxu0 0.0
    %615 = vmatprep.subr.mxu0 0.0
    %616 = vmatpush1.msra.mxu0 0.0
    %617 = vmatprep.subr.mxu0 0.0
    %618 = vmatpush1.msra.mxu0 0.0
    %619 = vmatprep.subr.mxu0 0.0
    %620 = vmatpush1.msra.mxu0 0.0
    %621 = vmatprep.subr.mxu0 0.0
    %622 = vmatpush1.msra.mxu0 0.0
    %623 = vmatprep.subr.mxu0 0.0
    %624 = vmatpush1.msra.mxu0 0.0
    %625 = vmatprep.subr.mxu0 0.0
    %626 = vmatpush1.msra.mxu0 0.0
    %627 = vmatprep.subr.mxu0 0.0
    %628 = vmatpush1.msra.mxu0 0.0
    %629 = vmatprep.subr.mxu0 0.0
    %630 = vmatpush1.msra.mxu0 0.0
    %631 = vmatprep.subr.mxu0 0.0
    %632 = vmatpush1.msra.mxu0 0.0
    %633 = vmatprep.subr.mxu0 0.0
    %634 = vmatpush1.msra.mxu0 %v139
    %635 = vmatprep.subr.mxu0 0.0
    %636 = vmatpush1.msra.mxu0 %v138
    %637 = vmatprep.subr.mxu0 0.0
    %638 = vmatpush1.msra.mxu0 %v137
    %639 = vmatprep.subr.mxu0 0.0
    %640 = vmatpush1.msra.mxu0 %v136
    %641 = vmatprep.subr.mxu0 0.0
    %642 = vmatpush2.msra.mxu0 0.0
    %643 = vmatprep.subr.mxu0 0.0
    %644 = vmatpush2.msra.mxu0 0.0
    %645 = vmatprep.subr.mxu0 0.0
    %646 = vmatpush2.msra.mxu0 0.0
    %647 = vmatprep.subr.mxu0 0.0
    %648 = vmatpush2.msra.mxu0 0.0
    %649 = vmatprep.subr.mxu0 0.0
    %650 = vmatpush2.msra.mxu0 0.0
    %651 = vmatprep.subr.mxu0 0.0
    %652 = vmatpush2.msra.mxu0 0.0
    %653 = vmatprep.subr.mxu0 0.0
    %654 = vmatpush2.msra.mxu0 0.0
    %655 = vmatprep.subr.mxu0 0.0
    %656 = vmatpush2.msra.mxu0 0.0
    %657 = vmatprep.subr.mxu0 0.0
    %658 = vmatpush2.msra.mxu0 0.0
    %659 = vmatprep.subr.mxu0 0.0
    %660 = vmatpush2.msra.mxu0 0.0
    %661 = vmatprep.subr.mxu0 0.0
    %662 = vmatpush2.msra.mxu0 0.0
    %663 = vmatprep.subr.mxu0 0.0
    %664 = vmatpush2.msra.mxu0 0.0
    %665 = vmatprep.subr.mxu0 0.0
    %666 = vmatpush2.msra.mxu0 0.0
    %667 = vmatprep.subr.mxu0 0.0
    %668 = vmatpush2.msra.mxu0 0.0
    %669 = vmatprep.subr.mxu0 0.0
    %670 = vmatpush2.msra.mxu0 0.0
    %671 = vmatprep.subr.mxu0 0.0
    %672 = vmatpush2.msra.mxu0 0.0
    %673 = vmatprep.mubr.f32.mxu0 0.0
    %674 = vmatmul.mubr.f32.gmra.mxu0 %v607
    %v675 = vpop.f32.mrf.mxu0
    %v676 = vadd.f32 0.0, %v675
    %v677 = vpop.f32.mrf.mxu0
    %678 = vdwg.mxu0
    %v680 = vrot.slane %v676, 4
    %v682 = vadd.f32 %v133, %v680
    %v683 = vmul.f32 %v682, %v143
    %v684 = vxor.u32 %v683, 2147483648
    %v685 = vmul.f32 %v684, 1.442695
    %v686 = vpow.pop %v685
    %v687 = vadd.f32 %v686, 1.0
    %v688 = vrcp.pop %v687
    %v689 = vmul.f32 1.0, %v688
    %v690 = vmul.f32 %v689, 2.0
    %v691 = vsub.f32 %v690, 1.0
    %v692 = vsel %vm142, %v691, %v689
    %v694 = vrot.slane %v591, 7
    %v696 = vmul.f32 %v692, %v694
    %698 = vrot.lane.b32.xlu0 %v692, 64
    %v699 = vpop.permute.xlu0 %698
    %v701 = vmul.f32 %v692, %v699
    %703 = vrot.lane.b32.xlu0 %v701, 32
    %v704 = vpop.permute.xlu0 %703
    %v706 = vadd.f32 %v696, %v704
    %v707 = vtanh.pop %v706
    %709 = vrot.lane.b32.xlu0 %v707, 64
    %v710 = vpop.permute.xlu0 %709
    %v712 = vmul.f32 %v692, %v710
    %714 = vrot.lane.b32.xlu0 %v712, 32
    %v715 = vpop.permute.xlu0 %714
    %vm717 = vcmask 258052
    %718 = vst.msk [vmem:[#allocation7] sm:$0x10] %vm717, %v715
    %v719 = vrot.slane %v712, 4
    %720 = vrot.lane.b32.xlu0 %v719, 32
    %v721 = vpop.permute.xlu0 %720
    %v722 = vsel %vm146, %v721, 0
    %724 = vmatprep.subr.mxu0 0.0
    %725 = vmatpush1.msra.mxu0 0.0
    %726 = vmatprep.subr.mxu0 0.0
    %727 = vmatpush1.msra.mxu0 0.0
    %728 = vmatprep.subr.mxu0 0.0
    %729 = vmatpush1.msra.mxu0 0.0
    %730 = vmatprep.subr.mxu0 0.0
    %731 = vmatpush1.msra.mxu0 0.0
    %732 = vmatprep.subr.mxu0 0.0
    %733 = vmatpush1.msra.mxu0 0.0
    %734 = vmatprep.subr.mxu0 0.0
    %735 = vmatpush1.msra.mxu0 0.0
    %736 = vmatprep.subr.mxu0 0.0
    %737 = vmatpush1.msra.mxu0 0.0
    %738 = vmatprep.subr.mxu0 0.0
    %739 = vmatpush1.msra.mxu0 0.0
    %740 = vmatprep.subr.mxu0 0.0
    %741 = vmatpush1.msra.mxu0 0.0
    %742 = vmatprep.subr.mxu0 0.0
    %743 = vmatpush1.msra.mxu0 0.0
    %744 = vmatprep.subr.mxu0 0.0
    %745 = vmatpush1.msra.mxu0 0.0
    %746 = vmatprep.subr.mxu0 0.0
    %747 = vmatpush1.msra.mxu0 0.0
    %748 = vmatprep.subr.mxu0 0.0
    %749 = vmatpush1.msra.mxu0 %v139
    %750 = vmatprep.subr.mxu0 0.0
    %751 = vmatpush1.msra.mxu0 %v138
    %752 = vmatprep.subr.mxu0 0.0
    %753 = vmatpush1.msra.mxu0 %v137
    %754 = vmatprep.subr.mxu0 0.0
    %755 = vmatpush1.msra.mxu0 %v136
    %756 = vmatprep.subr.mxu0 0.0
    %757 = vmatpush2.msra.mxu0 0.0
    %758 = vmatprep.subr.mxu0 0.0
    %759 = vmatpush2.msra.mxu0 0.0
    %760 = vmatprep.subr.mxu0 0.0
    %761 = vmatpush2.msra.mxu0 0.0
    %762 = vmatprep.subr.mxu0 0.0
    %763 = vmatpush2.msra.mxu0 0.0
    %764 = vmatprep.subr.mxu0 0.0
    %765 = vmatpush2.msra.mxu0 0.0
    %766 = vmatprep.subr.mxu0 0.0
    %767 = vmatpush2.msra.mxu0 0.0
    %768 = vmatprep.subr.mxu0 0.0
    %769 = vmatpush2.msra.mxu0 0.0
    %770 = vmatprep.subr.mxu0 0.0
    %771 = vmatpush2.msra.mxu0 0.0
    %772 = vmatprep.subr.mxu0 0.0
    %773 = vmatpush2.msra.mxu0 0.0
    %774 = vmatprep.subr.mxu0 0.0
    %775 = vmatpush2.msra.mxu0 0.0
    %776 = vmatprep.subr.mxu0 0.0
    %777 = vmatpush2.msra.mxu0 0.0
    %778 = vmatprep.subr.mxu0 0.0
    %779 = vmatpush2.msra.mxu0 0.0
    %780 = vmatprep.subr.mxu0 0.0
    %781 = vmatpush2.msra.mxu0 0.0
    %782 = vmatprep.subr.mxu0 0.0
    %783 = vmatpush2.msra.mxu0 0.0
    %784 = vmatprep.subr.mxu0 0.0
    %785 = vmatpush2.msra.mxu0 0.0
    %786 = vmatprep.subr.mxu0 0.0
    %787 = vmatpush2.msra.mxu0 0.0
    %788 = vmatprep.mubr.f32.mxu0 0.0
    %789 = vmatmul.mubr.f32.gmra.mxu0 %v722
    %v790 = vpop.f32.mrf.mxu0
    %v791 = vadd.f32 0.0, %v790
    %v792 = vpop.f32.mrf.mxu0
    %793 = vdwg.mxu0
    %v795 = vrot.slane %v791, 3
    %v797 = vadd.f32 %v133, %v795
    %v798 = vmul.f32 %v797, %v143
    %v799 = vxor.u32 %v798, 2147483648
    %v800 = vmul.f32 %v799, 1.442695
    %v801 = vpow.pop %v800
    %v802 = vadd.f32 %v801, 1.0
    %v803 = vrcp.pop %v802
    %v804 = vmul.f32 1.0, %v803
    %v805 = vmul.f32 %v804, 2.0
    %v806 = vsub.f32 %v805, 1.0
    %v807 = vsel %vm142, %v806, %v804
    %v809 = vrot.slane %v706, 7
    %v811 = vmul.f32 %v807, %v809
    %813 = vrot.lane.b32.xlu0 %v807, 64
    %v814 = vpop.permute.xlu0 %813
    %v816 = vmul.f32 %v807, %v814
    %818 = vrot.lane.b32.xlu0 %v816, 32
    %v819 = vpop.permute.xlu0 %818
    %v821 = vadd.f32 %v811, %v819
    %v822 = vtanh.pop %v821
    %824 = vrot.lane.b32.xlu0 %v822, 64
    %v825 = vpop.permute.xlu0 %824
    %v827 = vmul.f32 %v807, %v825
    %829 = vrot.lane.b32.xlu0 %v827, 32
    %v830 = vpop.permute.xlu0 %829
    %vm832 = vcmask 259077
    %833 = vst.msk [vmem:[#allocation7] sm:$0x20] %vm832, %v830
    %v834 = vrot.slane %v827, 5
    %835 = vrot.lane.b32.xlu0 %v834, 32
    %v836 = vpop.permute.xlu0 %835
    %v837 = vsel %vm146, %v836, 0
    %839 = vmatprep.subr.mxu0 0.0
    %840 = vmatpush1.msra.mxu0 0.0
    %841 = vmatprep.subr.mxu0 0.0
    %842 = vmatpush1.msra.mxu0 0.0
    %843 = vmatprep.subr.mxu0 0.0
    %844 = vmatpush1.msra.mxu0 0.0
    %845 = vmatprep.subr.mxu0 0.0
    %846 = vmatpush1.msra.mxu0 0.0
    %847 = vmatprep.subr.mxu0 0.0
    %848 = vmatpush1.msra.mxu0 0.0
    %849 = vmatprep.subr.mxu0 0.0
    %850 = vmatpush1.msra.mxu0 0.0
    %851 = vmatprep.subr.mxu0 0.0
    %852 = vmatpush1.msra.mxu0 0.0
    %853 = vmatprep.subr.mxu0 0.0
    %854 = vmatpush1.msra.mxu0 0.0
    %855 = vmatprep.subr.mxu0 0.0
    %856 = vmatpush1.msra.mxu0 0.0
    %857 = vmatprep.subr.mxu0 0.0
    %858 = vmatpush1.msra.mxu0 0.0
    %859 = vmatprep.subr.mxu0 0.0
    %860 = vmatpush1.msra.mxu0 0.0
    %861 = vmatprep.subr.mxu0 0.0
    %862 = vmatpush1.msra.mxu0 0.0
    %863 = vmatprep.subr.mxu0 0.0
    %864 = vmatpush1.msra.mxu0 %v139
    %865 = vmatprep.subr.mxu0 0.0
    %866 = vmatpush1.msra.mxu0 %v138
    %867 = vmatprep.subr.mxu0 0.0
    %868 = vmatpush1.msra.mxu0 %v137
    %869 = vmatprep.subr.mxu0 0.0
    %870 = vmatpush1.msra.mxu0 %v136
    %871 = vmatprep.subr.mxu0 0.0
    %872 = vmatpush2.msra.mxu0 0.0
    %873 = vmatprep.subr.mxu0 0.0
    %874 = vmatpush2.msra.mxu0 0.0
    %875 = vmatprep.subr.mxu0 0.0
    %876 = vmatpush2.msra.mxu0 0.0
    %877 = vmatprep.subr.mxu0 0.0
    %878 = vmatpush2.msra.mxu0 0.0
    %879 = vmatprep.subr.mxu0 0.0
    %880 = vmatpush2.msra.mxu0 0.0
    %881 = vmatprep.subr.mxu0 0.0
    %882 = vmatpush2.msra.mxu0 0.0
    %883 = vmatprep.subr.mxu0 0.0
    %884 = vmatpush2.msra.mxu0 0.0
    %885 = vmatprep.subr.mxu0 0.0
    %886 = vmatpush2.msra.mxu0 0.0
    %887 = vmatprep.subr.mxu0 0.0
    %888 = vmatpush2.msra.mxu0 0.0
    %889 = vmatprep.subr.mxu0 0.0
    %890 = vmatpush2.msra.mxu0 0.0
    %891 = vmatprep.subr.mxu0 0.0
    %892 = vmatpush2.msra.mxu0 0.0
    %893 = vmatprep.subr.mxu0 0.0
    %894 = vmatpush2.msra.mxu0 0.0
    %895 = vmatprep.subr.mxu0 0.0
    %896 = vmatpush2.msra.mxu0 0.0
    %897 = vmatprep.subr.mxu0 0.0
    %898 = vmatpush2.msra.mxu0 0.0
    %899 = vmatprep.subr.mxu0 0.0
    %900 = vmatpush2.msra.mxu0 0.0
    %901 = vmatprep.subr.mxu0 0.0
    %902 = vmatpush2.msra.mxu0 0.0
    %903 = vmatprep.mubr.f32.mxu0 0.0
    %904 = vmatmul.mubr.f32.gmra.mxu0 %v837
    %v905 = vpop.f32.mrf.mxu0
    %v906 = vadd.f32 0.0, %v905
    %v907 = vpop.f32.mrf.mxu0
    %908 = vdwg.mxu0
    %v910 = vrot.slane %v906, 2
    %v912 = vadd.f32 %v133, %v910
    %v913 = vmul.f32 %v912, %v143
    %v914 = vxor.u32 %v913, 2147483648
    %v915 = vmul.f32 %v914, 1.442695
    %v916 = vpow.pop %v915
    %v917 = vadd.f32 %v916, 1.0
    %v918 = vrcp.pop %v917
    %v919 = vmul.f32 1.0, %v918
    %v920 = vmul.f32 %v919, 2.0
    %v921 = vsub.f32 %v920, 1.0
    %v922 = vsel %vm142, %v921, %v919
    %v924 = vrot.slane %v821, 7
    %v926 = vmul.f32 %v922, %v924
    %928 = vrot.lane.b32.xlu0 %v922, 64
    %v929 = vpop.permute.xlu0 %928
    %v931 = vmul.f32 %v922, %v929
    %933 = vrot.lane.b32.xlu0 %v931, 32
    %v934 = vpop.permute.xlu0 %933
    %v936 = vadd.f32 %v926, %v934
    %v937 = vtanh.pop %v936
    %939 = vrot.lane.b32.xlu0 %v937, 64
    %v940 = vpop.permute.xlu0 %939
    %v942 = vmul.f32 %v922, %v940
    %944 = vrot.lane.b32.xlu0 %v942, 32
    %v945 = vpop.permute.xlu0 %944
    %vm947 = vcmask 260102
    %948 = vst.msk [vmem:[#allocation7] sm:$0x40] %vm947, %v945
    %v949 = vrot.slane %v942, 6
    %950 = vrot.lane.b32.xlu0 %v949, 32
    %v951 = vpop.permute.xlu0 %950
    %v952 = vsel %vm146, %v951, 0
    %954 = vmatprep.subr.mxu0 0.0
    %955 = vmatpush1.msra.mxu0 0.0
    %956 = vmatprep.subr.mxu0 0.0
    %957 = vmatpush1.msra.mxu0 0.0
    %958 = vmatprep.subr.mxu0 0.0
    %959 = vmatpush1.msra.mxu0 0.0
    %960 = vmatprep.subr.mxu0 0.0
    %961 = vmatpush1.msra.mxu0 0.0
    %962 = vmatprep.subr.mxu0 0.0
    %963 = vmatpush1.msra.mxu0 0.0
    %964 = vmatprep.subr.mxu0 0.0
    %965 = vmatpush1.msra.mxu0 0.0
    %966 = vmatprep.subr.mxu0 0.0
    %967 = vmatpush1.msra.mxu0 0.0
    %968 = vmatprep.subr.mxu0 0.0
    %969 = vmatpush1.msra.mxu0 0.0
    %970 = vmatprep.subr.mxu0 0.0
    %971 = vmatpush1.msra.mxu0 0.0
    %972 = vmatprep.subr.mxu0 0.0
    %973 = vmatpush1.msra.mxu0 0.0
    %974 = vmatprep.subr.mxu0 0.0
    %975 = vmatpush1.msra.mxu0 0.0
    %976 = vmatprep.subr.mxu0 0.0
    %977 = vmatpush1.msra.mxu0 0.0
    %978 = vmatprep.subr.mxu0 0.0
    %979 = vmatpush1.msra.mxu0 %v139
    %980 = vmatprep.subr.mxu0 0.0
    %981 = vmatpush1.msra.mxu0 %v138
    %982 = vmatprep.subr.mxu0 0.0
    %983 = vmatpush1.msra.mxu0 %v137
    %984 = vmatprep.subr.mxu0 0.0
    %985 = vmatpush1.msra.mxu0 %v136
    %986 = vmatprep.subr.mxu0 0.0
    %987 = vmatpush2.msra.mxu0 0.0
    %988 = vmatprep.subr.mxu0 0.0
    %989 = vmatpush2.msra.mxu0 0.0
    %990 = vmatprep.subr.mxu0 0.0
    %991 = vmatpush2.msra.mxu0 0.0
    %992 = vmatprep.subr.mxu0 0.0
    %993 = vmatpush2.msra.mxu0 0.0
    %994 = vmatprep.subr.mxu0 0.0
    %995 = vmatpush2.msra.mxu0 0.0
    %996 = vmatprep.subr.mxu0 0.0
    %997 = vmatpush2.msra.mxu0 0.0
    %998 = vmatprep.subr.mxu0 0.0
    %999 = vmatpush2.msra.mxu0 0.0
    %1000 = vmatprep.subr.mxu0 0.0
    %1001 = vmatpush2.msra.mxu0 0.0
    %1002 = vmatprep.subr.mxu0 0.0
    %1003 = vmatpush2.msra.mxu0 0.0
    %1004 = vmatprep.subr.mxu0 0.0
    %1005 = vmatpush2.msra.mxu0 0.0
    %1006 = vmatprep.subr.mxu0 0.0
    %1007 = vmatpush2.msra.mxu0 0.0
    %1008 = vmatprep.subr.mxu0 0.0
    %1009 = vmatpush2.msra.mxu0 0.0
    %1010 = vmatprep.subr.mxu0 0.0
    %1011 = vmatpush2.msra.mxu0 0.0
    %1012 = vmatprep.subr.mxu0 0.0
    %1013 = vmatpush2.msra.mxu0 0.0
    %1014 = vmatprep.subr.mxu0 0.0
    %1015 = vmatpush2.msra.mxu0 0.0
    %1016 = vmatprep.subr.mxu0 0.0
    %1017 = vmatpush2.msra.mxu0 0.0
    %1018 = vmatprep.mubr.f32.mxu0 0.0
    %1019 = vmatmul.mubr.f32.gmra.mxu0 %v952
    %v1020 = vpop.f32.mrf.mxu0
    %v1021 = vadd.f32 0.0, %v1020
    %v1022 = vpop.f32.mrf.mxu0
    %1023 = vdwg.mxu0
    %v1025 = vrot.slane %v1021, 1
    %v1027 = vadd.f32 %v133, %v1025
    %v1028 = vmul.f32 %v1027, %v143
    %v1029 = vxor.u32 %v1028, 2147483648
    %v1030 = vmul.f32 %v1029, 1.442695
    %v1031 = vpow.pop %v1030
    %v1032 = vadd.f32 %v1031, 1.0
    %v1033 = vrcp.pop %v1032
    %v1034 = vmul.f32 1.0, %v1033
    %v1035 = vmul.f32 %v1034, 2.0
    %v1036 = vsub.f32 %v1035, 1.0
    %v1037 = vsel %vm142, %v1036, %v1034
    %v1039 = vrot.slane %v936, 7
    %v1041 = vmul.f32 %v1037, %v1039
    %1043 = vrot.lane.b32.xlu0 %v1037, 64
    %v1044 = vpop.permute.xlu0 %1043
    %v1046 = vmul.f32 %v1037, %v1044
    %1048 = vrot.lane.b32.xlu0 %v1046, 32
    %v1049 = vpop.permute.xlu0 %1048
    %v1051 = vadd.f32 %v1041, %v1049
    %v1052 = vtanh.pop %v1051
    %1054 = vrot.lane.b32.xlu0 %v1052, 64
    %v1055 = vpop.permute.xlu0 %1054
    %v1057 = vmul.f32 %v1037, %v1055
    %1059 = vrot.lane.b32.xlu0 %v1057, 32
    %v1060 = vpop.permute.xlu0 %1059
    %vm1062 = vcmask 261127
    %1063 = vst.msk [vmem:[#allocation7] sm:$0x80] %vm1062, %v1060
    %1065 = vrot.lane.b32.xlu0 %v1051, 96
    %v1066 = vpop.permute.xlu0 %1065
    %1068 = vst.msk [vmem:[#allocation8 - $0x7] sm:$0x80] %vm1062, %v1066
    // Predicated region
    $region30: #{tpu_custom_call.1} parent=1 // pred_check
      _
    $region31: #{tpu_custom_call.1} parent=1 // pred_check_branch
      %1070 = sbr.rel (0) target = $region33
    $region32: #{tpu_custom_call.1} parent=1 // pred_region
      %s1072 = ssub.s32 128, 128
      %1073 = vsyncadd [#allocation4], %s1072
      %s1075 = sshll.u32 [#allocation7], 4
      %s1076 = int_to_ptr.vmem [resolvable:$true] %s1075
      %1078 = dma.vmem_to_hbm [thread:$0]  %s1076, 128, %s5, [#allocation4]
    $region33: #{tpu_custom_call.1} parent=1 // pred_fallthru
      _
    // Predicated region
    $region34: #{tpu_custom_call.1} parent=1 // pred_check
      _
    $region35: #{tpu_custom_call.1} parent=1 // pred_check_branch
      %1080 = sbr.rel (0) target = $region37
    $region36: #{tpu_custom_call.1} parent=1 // pred_region
      %s1082 = ssub.s32 16, 16
      %1083 = vsyncadd [#allocation9], %s1082
      %s1085 = sshll.u32 [#allocation8], 4
      %s1086 = int_to_ptr.vmem [resolvable:$true] %s1085
      %1088 = dma.vmem_to_hbm [thread:$0]  %s1086, 16, %s6, [#allocation9]
    $region37: #{tpu_custom_call.1} parent=1 // pred_fallthru
      _
    // Predicated region
    $region38: #{tpu_custom_call.1} parent=1 // pred_check
      _
    $region39: #{tpu_custom_call.1} parent=1 // pred_check_branch
      %1090 = sbr.rel (0) target = $region41
    $region40: #{tpu_custom_call.1} parent=1 // pred_region
      %1091 = dma.done [#allocation4], 128
    $region41: #{tpu_custom_call.1} parent=1 // pred_fallthru
      _
    // Predicated region
    $region42: #{tpu_custom_call.1} parent=1 // pred_check
      _
    $region43: #{tpu_custom_call.1} parent=1 // pred_check_branch
      %1093 = sbr.rel (0) target = $region45
    $region44: #{tpu_custom_call.1} parent=1 // pred_region
      %1094 = dma.done [#allocation9], 16
    $region45: #{tpu_custom_call.1} parent=1 // pred_fallthru
      _
    %1095 = vsyncpa [#allocation3], 1
    %1096 = vsyncpa [#allocation6], 1
    %1097 = vsyncpa [#allocation4], 1
    %1098 = vsyncpa [#allocation9], 1

</llo_original>
